<compile_context>
chip_gen: v7x
topology: tpu7x:2x2x1
jax: 0.10.0
libtpu: 0.0.40
codegen_flags: <defaults>
</compile_context>

<pallas_src>
import jax
import jax.numpy as jnp
import numpy as np
from jax.experimental import pallas as pl
from jax.experimental.pallas import tpu as pltpu  # noqa: F401  (kept for TPU-specific tuning hooks)


def _identity_copy_kernel(x_ref, o_ref):
    # Whole-tile copy (identity forward).
    o_ref[...] = x_ref[...]


def _lane_dense_2d_shape(total: int) -> tuple[int, int]:
    """Pick a (rows, cols) view with cols a multiple of 128 (lane-dense) and
    rows a multiple of 8 when possible, maximizing lane width."""
    if total % 128 != 0:
        # Fallback: single-row view; block == full array, still legal.
        return (1, total)
    cols = 128
    while total % (cols * 2) == 0 and total // (cols * 2) >= 8:
        cols *= 2
    return (total // cols, cols)


@jax.jit
def model_test_forward(x: jax.Array) -> jax.Array:
    """Pallas equivalent of ModelTest.forward (identity)."""
    orig_shape = x.shape
    total = int(np.prod(orig_shape))
    itemsize = jnp.dtype(x.dtype).itemsize

    # Wrapper-side layout plumbing: present a lane-dense 2-D slab to the kernel.
    flat_shape = _lane_dense_2d_shape(total)
    flat = x.reshape(flat_shape)

    out_flat = pl.pallas_call(
        _identity_copy_kernel,
        out_shape=jax.ShapeDtypeStruct(flat_shape, x.dtype),
        # Single grid step: the whole array is one block (block == full array
        # satisfies the (8,128)-or-full-extent rule for any shape).
        grid=(1,),
        in_specs=[pl.BlockSpec(flat_shape, lambda i: (0, 0))],
        out_specs=pl.BlockSpec(flat_shape, lambda i: (0, 0)),
        cost_estimate=pl.CostEstimate(
            flops=0,
            transcendentals=0,
            bytes_accessed=2 * total * itemsize,
        ),
    )(flat)

    return out_flat.reshape(orig_shape)


if __name__ == "__main__":
    key = jax.random.PRNGKey(0)
    # Small NCHW shape consistent with a generic image-like input.
    x = jax.random.normal(key, (2, 4, 16, 16), dtype=jnp.float32)

    out = model_test_forward(x)
    out = jax.block_until_ready(out)

    # Verify identity semantics exactly (shape, dtype, values).
    assert out.shape == x.shape
    assert out.dtype == x.dtype
    assert bool(jnp.all(out == x))

    print("KERNEL_OK")
</pallas_src>

<mosaic_0001>
module attributes {stable_mosaic.version = 11 : i64} {
  func.func @_identity_copy_kernel(%arg0: i32, %arg1: memref<8x256xf32, #tpu.memory_space<vmem>>, %arg2: memref<8x256xf32, #tpu.memory_space<vmem>>) attributes {dimension_semantics = [#tpu.dimension_semantics<arbitrary>], iteration_bounds = array<i64: 1>, scalar_prefetch = 0 : i64, scratch_operands = 0 : i64, tpu.core_type = #tpu.core_type<tc>, window_params = [{pipeline_mode = #tpu.pipeline_mode<synchronous>, transform_indices = @transform_0, window_bounds = array<i64: 8, 256>}, {pipeline_mode = #tpu.pipeline_mode<synchronous>, transform_indices = @transform_1, window_bounds = array<i64: 8, 256>}]} {
    %c0 = arith.constant 0 : index
    %c0_0 = arith.constant 0 : index
    %0 = vector.load %arg1[%c0, %c0_0] : memref<8x256xf32, #tpu.memory_space<vmem>>, vector<8x256xf32>
    %c0_1 = arith.constant 0 : index
    %c0_2 = arith.constant 0 : index
    %1 = vector.load %arg2[%c0_1, %c0_2] : memref<8x256xf32, #tpu.memory_space<vmem>>, vector<8x256xf32>
    tpu.vector_store %arg2[%c0_1, %c0_2], %0 {strides = array<i32>} : memref<8x256xf32, #tpu.memory_space<vmem>>, vector<8x256xf32>,
    return
  }
  func.func @transform_0(%arg0: i32) -> (i32, i32) {
    %c0_i32 = arith.constant 0 : i32
    %c0_i32_0 = arith.constant 0 : i32
    %c0_i32_1 = arith.constant 0 : i32
    return %c0_i32, %c0_i32_0 : i32, i32
  }
  func.func @transform_1(%arg0: i32) -> (i32, i32) {
    %c0_i32 = arith.constant 0 : i32
    %c0_i32_0 = arith.constant 0 : i32
    %c0_i32_1 = arith.constant 0 : i32
    return %c0_i32, %c0_i32_0 : i32, i32
  }
}

</mosaic_0001>

<llo_original>
// kernel: model_test_forward.1
$region0: #{model_test_forward.1}
  #allocation0 [shape = 'u32[]', space=smem, size = 0x4, offset = 0x4, fixed_abs, tag = 'smem constant byte address 0x4 - core index']
  #allocation1 [shape = 'u32[144,128]{1,0:T(1,128)}', space=vmem, size = 0x12000, scoped, tag = 'internal scratch']
  %s0 = inlined_call_operand.vmem [shape: f32[8,256], index: 0, kind: input, shape index: {}]
  %s1 = inlined_call_operand.vmem [shape: f32[8,256], index: 1, kind: output, shape index: {}]
  %s2 = sld [smem:[#allocation0]]
  $region14: #{model_test_forward.1} parent=0
    _
  %s4 = ssub.s32 1, %s2
  %s5 = scalar_select 0, %s4, %s2
  // Predicated region
  $region2: #{model_test_forward.1} parent=0 // pred_check
    _
  $region3: #{model_test_forward.1} parent=0 // pred_check_branch
    %7 = sbr.rel (0) target = $region5
  $region4: #{model_test_forward.1} parent=0 // pred_region
    _
  $region5: #{model_test_forward.1} parent=0 // pred_fallthru
    _
  %v8 = vld [vmem:[%s0] sm:$0xff]
  %v9 = vld [vmem:[%s0 + $0x8] sm:$0xff]
  %10 = vst [vmem:[%s1] sm:$0xff] %v8
  %11 = vst [vmem:[%s1 + $0x8] sm:$0xff] %v9
  // Predicated region
  $region6: #{model_test_forward.1} parent=0 // pred_check
    _
  $region7: #{model_test_forward.1} parent=0 // pred_check_branch
    %13 = sbr.rel (0) target = $region9
  $region8: #{model_test_forward.1} parent=0 // pred_region
    _
  $region9: #{model_test_forward.1} parent=0 // pred_fallthru
    _
  // Predicated region
  $region10: #{model_test_forward.1} parent=0 // pred_check
    _
  $region11: #{model_test_forward.1} parent=0 // pred_check_branch
    %15 = sbr.rel (0) target = $region13
  $region12: #{model_test_forward.1} parent=0 // pred_region
    _
  $region13: #{model_test_forward.1} parent=0 // pred_fallthru
    _

</llo_original>
